<compile_context>
chip_gen: v7x
topology: tpu7x:2x2x1
jax: 0.10.0
libtpu: 0.0.40
codegen_flags: <defaults>
</compile_context>

<pallas_src>
import functools

import jax
import jax.numpy as jnp
from jax.experimental import pallas as pl
from jax.experimental.pallas import tpu as pltpu


def _psin(x):
    """Branch-free parabolic approximation of sin(2*pi*x) (no trig, no selects)."""
    t = x - jnp.floor(x)                      # wrap to [0, 1)
    r = t - 0.5
    return -16.0 * r * (0.5 - jnp.abs(r))


def _tree_sum(terms):
    """Balanced pairwise add tree (short dependent chain on the VPU)."""
    while len(terms) > 1:
        nxt = [terms[i] + terms[i + 1] for i in range(0, len(terms) - 1, 2)]
        if len(terms) % 2:
            nxt.append(terms[-1])
        terms = nxt
    return terms[0]


def _pick_s_tile(S, hop, target_samples=4096):
    """Sample tile: multiple of 128*hop so the per-tile frame block is (8,128)-tileable;
    single tile when the clip is small or not evenly divisible."""
    unit = 128 * hop
    if S <= target_samples or S % unit != 0:
        return S
    n_units = max(1, target_samples // unit)
    while S % (n_units * unit) != 0:
        n_units -= 1
    return n_units * unit


def _sf_synth_kernel(frames_ref, z_ref, w_ref, out_ref, tail_ref, *,
                     num_harmonics, num_taps, hop, s_tile, carry_tail,
                     use_noise_filter_on_harm):
    f32 = jnp.float32
    K, T, S = num_harmonics, num_taps, s_tile
    C, Bb, Ft = frames_ref.shape
    NL = 3 + K                                  # linearly-interpolated channel count

    if carry_tail:
        @pl.when(pl.program_id(1) == 0)
        def _():                                # zero FIR state at the first sample tile
            tail_ref[...] = jnp.zeros_like(tail_ref)

    # ---- ONE fused ZOH upsample matmul for every frame-rate channel (MXU) ----------
    # (C, Bb, Ft) -> (C*Bb, Ft): Bb == 8, so this only merges whole sublane tiles.
    zoh = jnp.dot(frames_ref[...].reshape(C * Bb, Ft), w_ref[...],
                  preferred_element_type=f32).reshape(C, Bb, S)

    lane = jax.lax.broadcasted_iota(jnp.int32, (1, S), 1)
    lane_mod = lane % hop                              # sample position within its hop
    frac = lane_mod.astype(f32) * (1.0 / hop)          # (1, S): broadcasts over sublanes

    def lin_ch(c):                                     # linear interp == ZOH + frac * ZOH(delta)
        return zoh[c] + frac * zoh[NL + c]             # (Bb, S)

    phase_inc = lin_ch(0)
    voicing = lin_ch(1)
    log_gain = lin_ch(2)
    base = zoh[2 * NL + 2 * T]                         # frame-level cumulative phase (mod 1)

    # ---- oscillator: log2(hop)-step segmented intra-hop scan + host frame base ------
    scan = phase_inc
    shift = 1
    while shift < hop:
        rolled = pltpu.roll(scan, shift=shift, axis=1)
        scan = scan + jnp.where(lane_mod >= shift, rolled, 0.0)
        shift *= 2
    phi = base + scan
    phi = phi - jnp.floor(phi)                         # wrap mod 1 (exact for integer harmonics)

    harm = _tree_sum([lin_ch(3 + k) * _psin((k + 1.0) * phi) for k in range(K)])
    harm = harm * voicing                              # voicing gate

    # ---- noise generator -------------------------------------------------------------
    noise = z_ref[...] * jnp.exp(log_gain)

    # ---- causal LTV FIR: T-1 independent delayed copies + balanced MAC tree ----------
    def ltv_fir(x, tap0, slot):
        if carry_tail:
            prev = tail_ref[slot]                               # previous tile's last 128 samples
            x_ext = jnp.concatenate([prev, x], axis=1)          # (Bb, 128 + S)
            delayed = [x_ext[:, 128 - t:128 - t + S] for t in range(1, T)]
            tail_ref[slot] = x[:, S - 128:]
        else:                                                   # single tile: zero init. condition
            delayed = [jnp.where(lane >= t, pltpu.roll(x, shift=t, axis=1), 0.0)
                       for t in range(1, T)]
        terms = [zoh[tap0] * x] + [zoh[tap0 + t] * delayed[t - 1] for t in range(1, T)]
        return _tree_sum(terms)

    h_noise0 = 2 * NL                                  # first noise-filter tap channel
    h_end0 = 2 * NL + T                                # first end-filter tap channel

    if use_noise_filter_on_harm:
        harm = harm + ltv_fir(harm, h_noise0, 2)
    noise = ltv_fir(noise, h_noise0, 0)
    # harm_filter is None (module default) -> harmonic branch passes through unchanged.
    out_ref[...] = ltv_fir(harm + noise, h_end0, 1).astype(out_ref.dtype)


@functools.partial(jax.jit, static_argnames=("hop", "use_noise_filter_on_harm"))
def source_filter_synth(phase, voicing, amp, log_gain, h_noise, h_end, noise_z,
                        *, hop, use_noise_filter_on_harm=False):
    """phase/voicing/log_gain: (B, F); amp: (B, F, K); h_*: (B, F, T); noise_z: (B, F*hop)."""
    B, F = phase.shape
    S = F * hop
    K = amp.shape[-1]
    T = h_noise.shape[-1]
    assert noise_z.shape == (B, S)
    assert T <= 128                                    # carried FIR tail holds 128 samples
    f32 = jnp.float32

    phase = phase.astype(f32)
    voicing = voicing.astype(f32)
    log_gain = log_gain.astype(f32)
    amp = amp.astype(f32)
    h_noise = h_noise.astype(f32)
    h_end = h_end.astype(f32)
    z = noise_z.astype(f32)

    # ---- frame-level cumulative phase base (exclusive prefix of per-hop sums, mod 1) --
    phase_next = jnp.concatenate([phase[:, 1:], phase[:, -1:]], axis=1)
    hop_sum = phase * ((hop + 1) * 0.5) + phase_next * ((hop - 1) * 0.5)
    hop_sum = hop_sum - jnp.floor(hop_sum)             # wrap per frame (integer-harmonic exact)
    base = jnp.cumsum(hop_sum, axis=1) - hop_sum       # exclusive prefix over frames
    base = base - jnp.floor(base)                      # keep in [0,1) for f32 accuracy

    # ---- pack frame-rate channels: [lin values | lin fwd-deltas | taps | phase base] ---
    NL = 3 + K
    lin_vals = jnp.concatenate(
        [phase[None], voicing[None], log_gain[None], jnp.transpose(amp, (2, 0, 1))],
        axis=0)                                                           # (NL, B, F)
    lin_dels = jnp.concatenate(
        [lin_vals[:, :, 1:] - lin_vals[:, :, :-1], jnp.zeros_like(lin_vals[:, :, :1])],
        axis=2)                                                           # last-frame delta = 0
    frames = jnp.concatenate(
        [lin_vals, lin_dels,
         jnp.transpose(h_noise, (2, 0, 1)), jnp.transpose(h_end, (2, 0, 1)),
         base[None]], axis=0)                                             # (C_all, B, F)
    C_all = 2 * NL + 2 * T + 1

    # ---- batch-pack 8 elements per grid step (sublane-dense vector ops and stores) -----
    Bb = 8
    B_pad = -(-B // Bb) * Bb
    frames = jnp.pad(frames, ((0, 0), (0, B_pad - B), (0, 0)))
    z = jnp.pad(z, ((0, B_pad - B), (0, 0)))

    # ---- sample-axis tiling (bounds VMEM for long clips; single tile at small sizes) ---
    S_tile = _pick_s_tile(S, hop)
    F_tile = S_tile // hop
    ns = S // S_tile
    carry_tail = ns > 1

    # ZOH pattern is identical for every sample tile -> ONE small tile-invariant weight.
    w_zoh = jax.nn.one_hot(jnp.arange(S_tile) // hop, F_tile, dtype=f32).T   # (F_tile, S_tile)

    kernel = functools.partial(
        _sf_synth_kernel, num_harmonics=K, num_taps=T, hop=hop, s_tile=S_tile,
        carry_tail=carry_tail, use_noise_filter_on_harm=use_noise_filter_on_harm)

    out = pl.pallas_call(
        kernel,
        out_shape=jax.ShapeDtypeStruct((B_pad, S), f32),
        grid=(B_pad // Bb, ns),
        in_specs=[
            pl.BlockSpec((C_all, Bb, F_tile), lambda b, s: (0, b, s)),
            pl.BlockSpec((Bb, S_tile), lambda b, s: (b, s)),
            # tile-invariant ZOH weight: same tiny block every step (no O(F*S) constant).
            pl.BlockSpec((F_tile, S_tile), lambda b, s: (0, 0)),
        ],
        out_specs=pl.BlockSpec((Bb, S_tile), lambda b, s: (b, s)),
        scratch_shapes=[pltpu.VMEM((3, Bb, 128), f32)],    # carried FIR tails (per stage)
        compiler_params=pltpu.CompilerParams(
            dimension_semantics=("parallel", "arbitrary"),
            vmem_limit_bytes=32 * 1024 * 1024),
    )(frames, z, w_zoh)
    return out[:B]


if __name__ == "__main__":
    B, F, HOP, K, T = 2, 8, 16, 4, 8        # -> S = 128 samples
    S = F * HOP

    key = jax.random.PRNGKey(0)
    k1, k2, k3, k4, k5, k6, k7 = jax.random.split(key, 7)

    # frame-rate control inputs (deterministic, within the ranges torch asserts)
    phase = jax.random.uniform(k1, (B, F), minval=0.0, maxval=0.05)      # in [0, 0.5]
    voicing = jax.random.uniform(k2, (B, F), minval=0.0, maxval=1.0)     # in [0, 1]
    amp = jax.random.uniform(k3, (B, F, K)) / K                          # harm_osc_params
    log_gain = jax.random.uniform(k4, (B, F), minval=-2.0, maxval=-1.0)  # noise_params
    h_noise = 0.2 * jax.random.normal(k5, (B, F, T))                     # noise_filt_params
    h_end = 0.2 * jax.random.normal(k6, (B, F, T))                       # end_filt_params
    noise_z = jax.random.normal(k7, (B, S))                              # noise source

    # host-side equivalents of the in-forward torch asserts
    assert bool(jnp.all((phase >= 0.0) & (phase <= 0.5)))
    assert bool(jnp.all((voicing >= 0.0) & (voicing <= 1.0)))

    out = source_filter_synth(phase, voicing, amp, log_gain, h_noise, h_end,
                              noise_z, hop=HOP, use_noise_filter_on_harm=False)
    out = jax.block_until_ready(out)

    assert out.shape == (B, S) and out.dtype == jnp.float32
    assert bool(jnp.all(jnp.isfinite(out)))
    print("KERNEL_OK")
</pallas_src>

<mosaic_0001>
module attributes {stable_mosaic.version = 11 : i64} {
  func.func @_sf_synth_kernel(%arg0: i32, %arg1: i32, %arg2: memref<31x8x8xf32, #tpu.memory_space<vmem>>, %arg3: memref<8x128xf32, #tpu.memory_space<vmem>>, %arg4: memref<8x128xf32, #tpu.memory_space<vmem>>, %arg5: memref<8x128xf32, #tpu.memory_space<vmem>>, %arg6: memref<3x8x128xf32, #tpu.memory_space<vmem>>) attributes {dimension_semantics = [#tpu.dimension_semantics<parallel>, #tpu.dimension_semantics<arbitrary>], iteration_bounds = array<i64: 1, 1>, scalar_prefetch = 0 : i64, scratch_operands = 1 : i64, tpu.core_type = #tpu.core_type<tc>, window_params = [{transform_indices = @transform_0, window_bounds = array<i64: 31, 8, 8>}, {transform_indices = @transform_1, window_bounds = array<i64: 8, 128>}, {pipeline_mode = #tpu.pipeline_mode<synchronous>, transform_indices = @transform_2, window_bounds = array<i64: 8, 128>}, {transform_indices = @transform_3, window_bounds = array<i64: 8, 128>}]} {
    %c0 = arith.constant 0 : index
    %c0_0 = arith.constant 0 : index
    %c0_1 = arith.constant 0 : index
    %0 = vector.load %arg2[%c0, %c0_0, %c0_1] : memref<31x8x8xf32, #tpu.memory_space<vmem>>, vector<31x8x8xf32>
    %1 = vector.shape_cast %0 : vector<31x8x8xf32> to vector<248x8xf32>
    %c0_2 = arith.constant 0 : index
    %c0_3 = arith.constant 0 : index
    %2 = vector.load %arg4[%c0_2, %c0_3] : memref<8x128xf32, #tpu.memory_space<vmem>>, vector<8x128xf32>
    %cst = arith.constant dense<0.000000e+00> : vector<248x128xf32>
    %3 = tpu.matmul %1, %2, %cst {dimension_numbers = #tpu.dot_dimension_numbers<[1], [0], [0], [1], [0, 0, 1, 1], [], []>} : vector<248x8xf32>, vector<8x128xf32>, vector<248x128xf32> -> vector<248x128xf32>
    %4 = vector.shape_cast %3 : vector<248x128xf32> to vector<31x8x128xf32>
    %5 = tpu.iota {dimensions = array<i32: 1>} : vector<1x128xi32>
    %c16_i32 = arith.constant 16 : i32
    %c0_i32 = arith.constant 0 : i32
    %6 = arith.cmpi eq, %c16_i32, %c0_i32 : i32
    %c1_i32 = arith.constant 1 : i32
    %7 = arith.select %6, %c1_i32, %c16_i32 : i32
    %8 = vector.broadcast %7 : i32 to vector<1x128xi32>
    %9 = arith.remsi %5, %8 : vector<1x128xi32>
    %c0_i32_4 = arith.constant 0 : i32
    %10 = vector.broadcast %c0_i32_4 : i32 to vector<1x128xi32>
    %11 = arith.cmpi ne, %9, %10 : vector<1x128xi32>
    %c0_i32_5 = arith.constant 0 : i32
    %12 = vector.broadcast %c0_i32_5 : i32 to vector<1x128xi32>
    %13 = arith.cmpi slt, %9, %12 : vector<1x128xi32>
    %c0_i32_6 = arith.constant 0 : i32
    %14 = arith.cmpi slt, %7, %c0_i32_6 : i32
    %15 = vector.broadcast %14 : i1 to vector<1x128xi1>
    %16 = vector.broadcast %15 : vector<1x128xi1> to vector<1x128xi1>
    %17 = arith.xori %13, %16 : vector<1x128xi1>
    %18 = arith.andi %17, %11 : vector<1x128xi1>
    %19 = vector.broadcast %7 : i32 to vector<1x128xi32>
    %20 = arith.addi %9, %19 : vector<1x128xi32>
    %21 = arith.select %18, %20, %9 : vector<1x128xi1>, vector<1x128xi32>
    %22 = arith.sitofp %21 : vector<1x128xi32> to vector<1x128xf32>
    %cst_7 = arith.constant 6.250000e-02 : f32
    %23 = vector.broadcast %cst_7 : f32 to vector<1x128xf32>
    %24 = arith.mulf %22, %23 : vector<1x128xf32>
    %25 = vector.extract_strided_slice %4 {offsets = [0, 0, 0], sizes = [1, 8, 128], strides = [1, 1, 1]} : vector<31x8x128xf32> to vector<1x8x128xf32>
    %26 = vector.shape_cast %25 : vector<1x8x128xf32> to vector<8x128xf32>
    %27 = vector.extract_strided_slice %4 {offsets = [7, 0, 0], sizes = [1, 8, 128], strides = [1, 1, 1]} : vector<31x8x128xf32> to vector<1x8x128xf32>
    %28 = vector.shape_cast %27 : vector<1x8x128xf32> to vector<8x128xf32>
    %29 = vector.broadcast %24 : vector<1x128xf32> to vector<8x128xf32>
    %30 = arith.mulf %29, %28 : vector<8x128xf32>
    %31 = arith.addf %26, %30 : vector<8x128xf32>
    %32 = vector.extract_strided_slice %4 {offsets = [1, 0, 0], sizes = [1, 8, 128], strides = [1, 1, 1]} : vector<31x8x128xf32> to vector<1x8x128xf32>
    %33 = vector.shape_cast %32 : vector<1x8x128xf32> to vector<8x128xf32>
    %34 = vector.extract_strided_slice %4 {offsets = [8, 0, 0], sizes = [1, 8, 128], strides = [1, 1, 1]} : vector<31x8x128xf32> to vector<1x8x128xf32>
    %35 = vector.shape_cast %34 : vector<1x8x128xf32> to vector<8x128xf32>
    %36 = vector.broadcast %24 : vector<1x128xf32> to vector<8x128xf32>
    %37 = arith.mulf %36, %35 : vector<8x128xf32>
    %38 = arith.addf %33, %37 : vector<8x128xf32>
    %39 = vector.extract_strided_slice %4 {offsets = [2, 0, 0], sizes = [1, 8, 128], strides = [1, 1, 1]} : vector<31x8x128xf32> to vector<1x8x128xf32>
    %40 = vector.shape_cast %39 : vector<1x8x128xf32> to vector<8x128xf32>
    %41 = vector.extract_strided_slice %4 {offsets = [9, 0, 0], sizes = [1, 8, 128], strides = [1, 1, 1]} : vector<31x8x128xf32> to vector<1x8x128xf32>
    %42 = vector.shape_cast %41 : vector<1x8x128xf32> to vector<8x128xf32>
    %43 = vector.broadcast %24 : vector<1x128xf32> to vector<8x128xf32>
    %44 = arith.mulf %43, %42 : vector<8x128xf32>
    %45 = arith.addf %40, %44 : vector<8x128xf32>
    %46 = vector.extract_strided_slice %4 {offsets = [30, 0, 0], sizes = [1, 8, 128], strides = [1, 1, 1]} : vector<31x8x128xf32> to vector<1x8x128xf32>
    %47 = vector.shape_cast %46 : vector<1x8x128xf32> to vector<8x128xf32>
    %c1_i32_8 = arith.constant 1 : i32
    %48 = tpu.dynamic_rotate %31 by %c1_i32_8 dim 1 : vector<8x128xf32>, i32 -> vector<8x128xf32>
    %c1_i32_9 = arith.constant 1 : i32
    %49 = vector.broadcast %c1_i32_9 : i32 to vector<1x128xi32>
    %50 = arith.cmpi sge, %21, %49 : vector<1x128xi32>
    %cst_10 = arith.constant 0.000000e+00 : f32
    %51 = vector.shape_cast %50 : vector<1x128xi1> to vector<1x128xi1>
    %52 = vector.broadcast %51 : vector<1x128xi1> to vector<8x128xi1>
    %53 = vector.broadcast %cst_10 : f32 to vector<8x128xf32>
    %54 = arith.select %52, %48, %53 : vector<8x128xi1>, vector<8x128xf32>
    %55 = arith.addf %31, %54 : vector<8x128xf32>
    %c2_i32 = arith.constant 2 : i32
    %56 = tpu.dynamic_rotate %55 by %c2_i32 dim 1 : vector<8x128xf32>, i32 -> vector<8x128xf32>
    %c2_i32_11 = arith.constant 2 : i32
    %57 = vector.broadcast %c2_i32_11 : i32 to vector<1x128xi32>
    %58 = arith.cmpi sge, %21, %57 : vector<1x128xi32>
    %cst_12 = arith.constant 0.000000e+00 : f32
    %59 = vector.shape_cast %58 : vector<1x128xi1> to vector<1x128xi1>
    %60 = vector.broadcast %59 : vector<1x128xi1> to vector<8x128xi1>
    %61 = vector.broadcast %cst_12 : f32 to vector<8x128xf32>
    %62 = arith.select %60, %56, %61 : vector<8x128xi1>, vector<8x128xf32>
    %63 = arith.addf %55, %62 : vector<8x128xf32>
    %c4_i32 = arith.constant 4 : i32
    %64 = tpu.dynamic_rotate %63 by %c4_i32 dim 1 : vector<8x128xf32>, i32 -> vector<8x128xf32>
    %c4_i32_13 = arith.constant 4 : i32
    %65 = vector.broadcast %c4_i32_13 : i32 to vector<1x128xi32>
    %66 = arith.cmpi sge, %21, %65 : vector<1x128xi32>
    %cst_14 = arith.constant 0.000000e+00 : f32
    %67 = vector.shape_cast %66 : vector<1x128xi1> to vector<1x128xi1>
    %68 = vector.broadcast %67 : vector<1x128xi1> to vector<8x128xi1>
    %69 = vector.broadcast %cst_14 : f32 to vector<8x128xf32>
    %70 = arith.select %68, %64, %69 : vector<8x128xi1>, vector<8x128xf32>
    %71 = arith.addf %63, %70 : vector<8x128xf32>
    %c8_i32 = arith.constant 8 : i32
    %72 = tpu.dynamic_rotate %71 by %c8_i32 dim 1 : vector<8x128xf32>, i32 -> vector<8x128xf32>
    %c8_i32_15 = arith.constant 8 : i32
    %73 = vector.broadcast %c8_i32_15 : i32 to vector<1x128xi32>
    %74 = arith.cmpi sge, %21, %73 : vector<1x128xi32>
    %cst_16 = arith.constant 0.000000e+00 : f32
    %75 = vector.shape_cast %74 : vector<1x128xi1> to vector<1x128xi1>
    %76 = vector.broadcast %75 : vector<1x128xi1> to vector<8x128xi1>
    %77 = vector.broadcast %cst_16 : f32 to vector<8x128xf32>
    %78 = arith.select %76, %72, %77 : vector<8x128xi1>, vector<8x128xf32>
    %79 = arith.addf %71, %78 : vector<8x128xf32>
    %80 = arith.addf %47, %79 : vector<8x128xf32>
    %81 = math.floor %80 : vector<8x128xf32>
    %82 = arith.subf %80, %81 : vector<8x128xf32>
    %83 = vector.extract_strided_slice %4 {offsets = [3, 0, 0], sizes = [1, 8, 128], strides = [1, 1, 1]} : vector<31x8x128xf32> to vector<1x8x128xf32>
    %84 = vector.shape_cast %83 : vector<1x8x128xf32> to vector<8x128xf32>
    %85 = vector.extract_strided_slice %4 {offsets = [10, 0, 0], sizes = [1, 8, 128], strides = [1, 1, 1]} : vector<31x8x128xf32> to vector<1x8x128xf32>
    %86 = vector.shape_cast %85 : vector<1x8x128xf32> to vector<8x128xf32>
    %87 = vector.broadcast %24 : vector<1x128xf32> to vector<8x128xf32>
    %88 = arith.mulf %87, %86 : vector<8x128xf32>
    %89 = arith.addf %84, %88 : vector<8x128xf32>
    %cst_17 = arith.constant 1.000000e+00 : f32
    %90 = vector.broadcast %cst_17 : f32 to vector<8x128xf32>
    %91 = arith.mulf %90, %82 : vector<8x128xf32>
    %92 = math.floor %91 : vector<8x128xf32>
    %93 = arith.subf %91, %92 : vector<8x128xf32>
    %cst_18 = arith.constant 5.000000e-01 : f32
    %94 = vector.broadcast %cst_18 : f32 to vector<8x128xf32>
    %95 = arith.subf %93, %94 : vector<8x128xf32>
    %cst_19 = arith.constant -1.600000e+01 : f32
    %96 = vector.broadcast %cst_19 : f32 to vector<8x128xf32>
    %97 = arith.mulf %96, %95 : vector<8x128xf32>
    %98 = math.absf %95 : vector<8x128xf32>
    %cst_20 = arith.constant 5.000000e-01 : f32
    %99 = vector.broadcast %cst_20 : f32 to vector<8x128xf32>
    %100 = arith.subf %99, %98 : vector<8x128xf32>
    %101 = arith.mulf %97, %100 : vector<8x128xf32>
    %102 = arith.mulf %89, %101 : vector<8x128xf32>
    %103 = vector.extract_strided_slice %4 {offsets = [4, 0, 0], sizes = [1, 8, 128], strides = [1, 1, 1]} : vector<31x8x128xf32> to vector<1x8x128xf32>
    %104 = vector.shape_cast %103 : vector<1x8x128xf32> to vector<8x128xf32>
    %105 = vector.extract_strided_slice %4 {offsets = [11, 0, 0], sizes = [1, 8, 128], strides = [1, 1, 1]} : vector<31x8x128xf32> to vector<1x8x128xf32>
    %106 = vector.shape_cast %105 : vector<1x8x128xf32> to vector<8x128xf32>
    %107 = vector.broadcast %24 : vector<1x128xf32> to vector<8x128xf32>
    %108 = arith.mulf %107, %106 : vector<8x128xf32>
    %109 = arith.addf %104, %108 : vector<8x128xf32>
    %cst_21 = arith.constant 2.000000e+00 : f32
    %110 = vector.broadcast %cst_21 : f32 to vector<8x128xf32>
    %111 = arith.mulf %110, %82 : vector<8x128xf32>
    %112 = math.floor %111 : vector<8x128xf32>
    %113 = arith.subf %111, %112 : vector<8x128xf32>
    %cst_22 = arith.constant 5.000000e-01 : f32
    %114 = vector.broadcast %cst_22 : f32 to vector<8x128xf32>
    %115 = arith.subf %113, %114 : vector<8x128xf32>
    %cst_23 = arith.constant -1.600000e+01 : f32
    %116 = vector.broadcast %cst_23 : f32 to vector<8x128xf32>
    %117 = arith.mulf %116, %115 : vector<8x128xf32>
    %118 = math.absf %115 : vector<8x128xf32>
    %cst_24 = arith.constant 5.000000e-01 : f32
    %119 = vector.broadcast %cst_24 : f32 to vector<8x128xf32>
    %120 = arith.subf %119, %118 : vector<8x128xf32>
    %121 = arith.mulf %117, %120 : vector<8x128xf32>
    %122 = arith.mulf %109, %121 : vector<8x128xf32>
    %123 = vector.extract_strided_slice %4 {offsets = [5, 0, 0], sizes = [1, 8, 128], strides = [1, 1, 1]} : vector<31x8x128xf32> to vector<1x8x128xf32>
    %124 = vector.shape_cast %123 : vector<1x8x128xf32> to vector<8x128xf32>
    %125 = vector.extract_strided_slice %4 {offsets = [12, 0, 0], sizes = [1, 8, 128], strides = [1, 1, 1]} : vector<31x8x128xf32> to vector<1x8x128xf32>
    %126 = vector.shape_cast %125 : vector<1x8x128xf32> to vector<8x128xf32>
    %127 = vector.broadcast %24 : vector<1x128xf32> to vector<8x128xf32>
    %128 = arith.mulf %127, %126 : vector<8x128xf32>
    %129 = arith.addf %124, %128 : vector<8x128xf32>
    %cst_25 = arith.constant 3.000000e+00 : f32
    %130 = vector.broadcast %cst_25 : f32 to vector<8x128xf32>
    %131 = arith.mulf %130, %82 : vector<8x128xf32>
    %132 = math.floor %131 : vector<8x128xf32>
    %133 = arith.subf %131, %132 : vector<8x128xf32>
    %cst_26 = arith.constant 5.000000e-01 : f32
    %134 = vector.broadcast %cst_26 : f32 to vector<8x128xf32>
    %135 = arith.subf %133, %134 : vector<8x128xf32>
    %cst_27 = arith.constant -1.600000e+01 : f32
    %136 = vector.broadcast %cst_27 : f32 to vector<8x128xf32>
    %137 = arith.mulf %136, %135 : vector<8x128xf32>
    %138 = math.absf %135 : vector<8x128xf32>
    %cst_28 = arith.constant 5.000000e-01 : f32
    %139 = vector.broadcast %cst_28 : f32 to vector<8x128xf32>
    %140 = arith.subf %139, %138 : vector<8x128xf32>
    %141 = arith.mulf %137, %140 : vector<8x128xf32>
    %142 = arith.mulf %129, %141 : vector<8x128xf32>
    %143 = vector.extract_strided_slice %4 {offsets = [6, 0, 0], sizes = [1, 8, 128], strides = [1, 1, 1]} : vector<31x8x128xf32> to vector<1x8x128xf32>
    %144 = vector.shape_cast %143 : vector<1x8x128xf32> to vector<8x128xf32>
    %145 = vector.extract_strided_slice %4 {offsets = [13, 0, 0], sizes = [1, 8, 128], strides = [1, 1, 1]} : vector<31x8x128xf32> to vector<1x8x128xf32>
    %146 = vector.shape_cast %145 : vector<1x8x128xf32> to vector<8x128xf32>
    %147 = vector.broadcast %24 : vector<1x128xf32> to vector<8x128xf32>
    %148 = arith.mulf %147, %146 : vector<8x128xf32>
    %149 = arith.addf %144, %148 : vector<8x128xf32>
    %cst_29 = arith.constant 4.000000e+00 : f32
    %150 = vector.broadcast %cst_29 : f32 to vector<8x128xf32>
    %151 = arith.mulf %150, %82 : vector<8x128xf32>
    %152 = math.floor %151 : vector<8x128xf32>
    %153 = arith.subf %151, %152 : vector<8x128xf32>
    %cst_30 = arith.constant 5.000000e-01 : f32
    %154 = vector.broadcast %cst_30 : f32 to vector<8x128xf32>
    %155 = arith.subf %153, %154 : vector<8x128xf32>
    %cst_31 = arith.constant -1.600000e+01 : f32
    %156 = vector.broadcast %cst_31 : f32 to vector<8x128xf32>
    %157 = arith.mulf %156, %155 : vector<8x128xf32>
    %158 = math.absf %155 : vector<8x128xf32>
    %cst_32 = arith.constant 5.000000e-01 : f32
    %159 = vector.broadcast %cst_32 : f32 to vector<8x128xf32>
    %160 = arith.subf %159, %158 : vector<8x128xf32>
    %161 = arith.mulf %157, %160 : vector<8x128xf32>
    %162 = arith.mulf %149, %161 : vector<8x128xf32>
    %163 = arith.addf %102, %122 : vector<8x128xf32>
    %164 = arith.addf %142, %162 : vector<8x128xf32>
    %165 = arith.addf %163, %164 : vector<8x128xf32>
    %166 = arith.mulf %165, %38 : vector<8x128xf32>
    %c0_33 = arith.constant 0 : index
    %c0_34 = arith.constant 0 : index
    %167 = vector.load %arg3[%c0_33, %c0_34] : memref<8x128xf32, #tpu.memory_space<vmem>>, vector<8x128xf32>
    %168 = math.exp %45 : vector<8x128xf32>
    %169 = arith.mulf %167, %168 : vector<8x128xf32>
    %c1_i32_35 = arith.constant 1 : i32
    %170 = vector.broadcast %c1_i32_35 : i32 to vector<1x128xi32>
    %171 = arith.cmpi sge, %5, %170 : vector<1x128xi32>
    %c1_i32_36 = arith.constant 1 : i32
    %172 = tpu.dynamic_rotate %169 by %c1_i32_36 dim 1 : vector<8x128xf32>, i32 -> vector<8x128xf32>
    %cst_37 = arith.constant 0.000000e+00 : f32
    %173 = vector.shape_cast %171 : vector<1x128xi1> to vector<1x128xi1>
    %174 = vector.broadcast %173 : vector<1x128xi1> to vector<8x128xi1>
    %175 = vector.broadcast %cst_37 : f32 to vector<8x128xf32>
    %176 = arith.select %174, %172, %175 : vector<8x128xi1>, vector<8x128xf32>
    %c2_i32_38 = arith.constant 2 : i32
    %177 = vector.broadcast %c2_i32_38 : i32 to vector<1x128xi32>
    %178 = arith.cmpi sge, %5, %177 : vector<1x128xi32>
    %c2_i32_39 = arith.constant 2 : i32
    %179 = tpu.dynamic_rotate %169 by %c2_i32_39 dim 1 : vector<8x128xf32>, i32 -> vector<8x128xf32>
    %cst_40 = arith.constant 0.000000e+00 : f32
    %180 = vector.shape_cast %178 : vector<1x128xi1> to vector<1x128xi1>
    %181 = vector.broadcast %180 : vector<1x128xi1> to vector<8x128xi1>
    %182 = vector.broadcast %cst_40 : f32 to vector<8x128xf32>
    %183 = arith.select %181, %179, %182 : vector<8x128xi1>, vector<8x128xf32>
    %c3_i32 = arith.constant 3 : i32
    %184 = vector.broadcast %c3_i32 : i32 to vector<1x128xi32>
    %185 = arith.cmpi sge, %5, %184 : vector<1x128xi32>
    %c3_i32_41 = arith.constant 3 : i32
    %186 = tpu.dynamic_rotate %169 by %c3_i32_41 dim 1 : vector<8x128xf32>, i32 -> vector<8x128xf32>
    %cst_42 = arith.constant 0.000000e+00 : f32
    %187 = vector.shape_cast %185 : vector<1x128xi1> to vector<1x128xi1>
    %188 = vector.broadcast %187 : vector<1x128xi1> to vector<8x128xi1>
    %189 = vector.broadcast %cst_42 : f32 to vector<8x128xf32>
    %190 = arith.select %188, %186, %189 : vector<8x128xi1>, vector<8x128xf32>
    %c4_i32_43 = arith.constant 4 : i32
    %191 = vector.broadcast %c4_i32_43 : i32 to vector<1x128xi32>
    %192 = arith.cmpi sge, %5, %191 : vector<1x128xi32>
    %c4_i32_44 = arith.constant 4 : i32
    %193 = tpu.dynamic_rotate %169 by %c4_i32_44 dim 1 : vector<8x128xf32>, i32 -> vector<8x128xf32>
    %cst_45 = arith.constant 0.000000e+00 : f32
    %194 = vector.shape_cast %192 : vector<1x128xi1> to vector<1x128xi1>
    %195 = vector.broadcast %194 : vector<1x128xi1> to vector<8x128xi1>
    %196 = vector.broadcast %cst_45 : f32 to vector<8x128xf32>
    %197 = arith.select %195, %193, %196 : vector<8x128xi1>, vector<8x128xf32>
    %c5_i32 = arith.constant 5 : i32
    %198 = vector.broadcast %c5_i32 : i32 to vector<1x128xi32>
    %199 = arith.cmpi sge, %5, %198 : vector<1x128xi32>
    %c5_i32_46 = arith.constant 5 : i32
    %200 = tpu.dynamic_rotate %169 by %c5_i32_46 dim 1 : vector<8x128xf32>, i32 -> vector<8x128xf32>
    %cst_47 = arith.constant 0.000000e+00 : f32
    %201 = vector.shape_cast %199 : vector<1x128xi1> to vector<1x128xi1>
    %202 = vector.broadcast %201 : vector<1x128xi1> to vector<8x128xi1>
    %203 = vector.broadcast %cst_47 : f32 to vector<8x128xf32>
    %204 = arith.select %202, %200, %203 : vector<8x128xi1>, vector<8x128xf32>
    %c6_i32 = arith.constant 6 : i32
    %205 = vector.broadcast %c6_i32 : i32 to vector<1x128xi32>
    %206 = arith.cmpi sge, %5, %205 : vector<1x128xi32>
    %c6_i32_48 = arith.constant 6 : i32
    %207 = tpu.dynamic_rotate %169 by %c6_i32_48 dim 1 : vector<8x128xf32>, i32 -> vector<8x128xf32>
    %cst_49 = arith.constant 0.000000e+00 : f32
    %208 = vector.shape_cast %206 : vector<1x128xi1> to vector<1x128xi1>
    %209 = vector.broadcast %208 : vector<1x128xi1> to vector<8x128xi1>
    %210 = vector.broadcast %cst_49 : f32 to vector<8x128xf32>
    %211 = arith.select %209, %207, %210 : vector<8x128xi1>, vector<8x128xf32>
    %c7_i32 = arith.constant 7 : i32
    %212 = vector.broadcast %c7_i32 : i32 to vector<1x128xi32>
    %213 = arith.cmpi sge, %5, %212 : vector<1x128xi32>
    %c7_i32_50 = arith.constant 7 : i32
    %214 = tpu.dynamic_rotate %169 by %c7_i32_50 dim 1 : vector<8x128xf32>, i32 -> vector<8x128xf32>
    %cst_51 = arith.constant 0.000000e+00 : f32
    %215 = vector.shape_cast %213 : vector<1x128xi1> to vector<1x128xi1>
    %216 = vector.broadcast %215 : vector<1x128xi1> to vector<8x128xi1>
    %217 = vector.broadcast %cst_51 : f32 to vector<8x128xf32>
    %218 = arith.select %216, %214, %217 : vector<8x128xi1>, vector<8x128xf32>
    %219 = vector.extract_strided_slice %4 {offsets = [14, 0, 0], sizes = [1, 8, 128], strides = [1, 1, 1]} : vector<31x8x128xf32> to vector<1x8x128xf32>
    %220 = vector.shape_cast %219 : vector<1x8x128xf32> to vector<8x128xf32>
    %221 = arith.mulf %220, %169 : vector<8x128xf32>
    %222 = vector.extract_strided_slice %4 {offsets = [15, 0, 0], sizes = [1, 8, 128], strides = [1, 1, 1]} : vector<31x8x128xf32> to vector<1x8x128xf32>
    %223 = vector.shape_cast %222 : vector<1x8x128xf32> to vector<8x128xf32>
    %224 = arith.mulf %223, %176 : vector<8x128xf32>
    %225 = vector.extract_strided_slice %4 {offsets = [16, 0, 0], sizes = [1, 8, 128], strides = [1, 1, 1]} : vector<31x8x128xf32> to vector<1x8x128xf32>
    %226 = vector.shape_cast %225 : vector<1x8x128xf32> to vector<8x128xf32>
    %227 = arith.mulf %226, %183 : vector<8x128xf32>
    %228 = vector.extract_strided_slice %4 {offsets = [17, 0, 0], sizes = [1, 8, 128], strides = [1, 1, 1]} : vector<31x8x128xf32> to vector<1x8x128xf32>
    %229 = vector.shape_cast %228 : vector<1x8x128xf32> to vector<8x128xf32>
    %230 = arith.mulf %229, %190 : vector<8x128xf32>
    %231 = vector.extract_strided_slice %4 {offsets = [18, 0, 0], sizes = [1, 8, 128], strides = [1, 1, 1]} : vector<31x8x128xf32> to vector<1x8x128xf32>
    %232 = vector.shape_cast %231 : vector<1x8x128xf32> to vector<8x128xf32>
    %233 = arith.mulf %232, %197 : vector<8x128xf32>
    %234 = vector.extract_strided_slice %4 {offsets = [19, 0, 0], sizes = [1, 8, 128], strides = [1, 1, 1]} : vector<31x8x128xf32> to vector<1x8x128xf32>
    %235 = vector.shape_cast %234 : vector<1x8x128xf32> to vector<8x128xf32>
    %236 = arith.mulf %235, %204 : vector<8x128xf32>
    %237 = vector.extract_strided_slice %4 {offsets = [20, 0, 0], sizes = [1, 8, 128], strides = [1, 1, 1]} : vector<31x8x128xf32> to vector<1x8x128xf32>
    %238 = vector.shape_cast %237 : vector<1x8x128xf32> to vector<8x128xf32>
    %239 = arith.mulf %238, %211 : vector<8x128xf32>
    %240 = vector.extract_strided_slice %4 {offsets = [21, 0, 0], sizes = [1, 8, 128], strides = [1, 1, 1]} : vector<31x8x128xf32> to vector<1x8x128xf32>
    %241 = vector.shape_cast %240 : vector<1x8x128xf32> to vector<8x128xf32>
    %242 = arith.mulf %241, %218 : vector<8x128xf32>
    %243 = arith.addf %221, %224 : vector<8x128xf32>
    %244 = arith.addf %227, %230 : vector<8x128xf32>
    %245 = arith.addf %233, %236 : vector<8x128xf32>
    %246 = arith.addf %239, %242 : vector<8x128xf32>
    %247 = arith.addf %243, %244 : vector<8x128xf32>
    %248 = arith.addf %245, %246 : vector<8x128xf32>
    %249 = arith.addf %247, %248 : vector<8x128xf32>
    %250 = arith.addf %166, %249 : vector<8x128xf32>
    %c1_i32_52 = arith.constant 1 : i32
    %251 = vector.broadcast %c1_i32_52 : i32 to vector<1x128xi32>
    %252 = arith.cmpi sge, %5, %251 : vector<1x128xi32>
    %c1_i32_53 = arith.constant 1 : i32
    %253 = tpu.dynamic_rotate %250 by %c1_i32_53 dim 1 : vector<8x128xf32>, i32 -> vector<8x128xf32>
    %cst_54 = arith.constant 0.000000e+00 : f32
    %254 = vector.shape_cast %252 : vector<1x128xi1> to vector<1x128xi1>
    %255 = vector.broadcast %254 : vector<1x128xi1> to vector<8x128xi1>
    %256 = vector.broadcast %cst_54 : f32 to vector<8x128xf32>
    %257 = arith.select %255, %253, %256 : vector<8x128xi1>, vector<8x128xf32>
    %c2_i32_55 = arith.constant 2 : i32
    %258 = vector.broadcast %c2_i32_55 : i32 to vector<1x128xi32>
    %259 = arith.cmpi sge, %5, %258 : vector<1x128xi32>
    %c2_i32_56 = arith.constant 2 : i32
    %260 = tpu.dynamic_rotate %250 by %c2_i32_56 dim 1 : vector<8x128xf32>, i32 -> vector<8x128xf32>
    %cst_57 = arith.constant 0.000000e+00 : f32
    %261 = vector.shape_cast %259 : vector<1x128xi1> to vector<1x128xi1>
    %262 = vector.broadcast %261 : vector<1x128xi1> to vector<8x128xi1>
    %263 = vector.broadcast %cst_57 : f32 to vector<8x128xf32>
    %264 = arith.select %262, %260, %263 : vector<8x128xi1>, vector<8x128xf32>
    %c3_i32_58 = arith.constant 3 : i32
    %265 = vector.broadcast %c3_i32_58 : i32 to vector<1x128xi32>
    %266 = arith.cmpi sge, %5, %265 : vector<1x128xi32>
    %c3_i32_59 = arith.constant 3 : i32
    %267 = tpu.dynamic_rotate %250 by %c3_i32_59 dim 1 : vector<8x128xf32>, i32 -> vector<8x128xf32>
    %cst_60 = arith.constant 0.000000e+00 : f32
    %268 = vector.shape_cast %266 : vector<1x128xi1> to vector<1x128xi1>
    %269 = vector.broadcast %268 : vector<1x128xi1> to vector<8x128xi1>
    %270 = vector.broadcast %cst_60 : f32 to vector<8x128xf32>
    %271 = arith.select %269, %267, %270 : vector<8x128xi1>, vector<8x128xf32>
    %c4_i32_61 = arith.constant 4 : i32
    %272 = vector.broadcast %c4_i32_61 : i32 to vector<1x128xi32>
    %273 = arith.cmpi sge, %5, %272 : vector<1x128xi32>
    %c4_i32_62 = arith.constant 4 : i32
    %274 = tpu.dynamic_rotate %250 by %c4_i32_62 dim 1 : vector<8x128xf32>, i32 -> vector<8x128xf32>
    %cst_63 = arith.constant 0.000000e+00 : f32
    %275 = vector.shape_cast %273 : vector<1x128xi1> to vector<1x128xi1>
    %276 = vector.broadcast %275 : vector<1x128xi1> to vector<8x128xi1>
    %277 = vector.broadcast %cst_63 : f32 to vector<8x128xf32>
    %278 = arith.select %276, %274, %277 : vector<8x128xi1>, vector<8x128xf32>
    %c5_i32_64 = arith.constant 5 : i32
    %279 = vector.broadcast %c5_i32_64 : i32 to vector<1x128xi32>
    %280 = arith.cmpi sge, %5, %279 : vector<1x128xi32>
    %c5_i32_65 = arith.constant 5 : i32
    %281 = tpu.dynamic_rotate %250 by %c5_i32_65 dim 1 : vector<8x128xf32>, i32 -> vector<8x128xf32>
    %cst_66 = arith.constant 0.000000e+00 : f32
    %282 = vector.shape_cast %280 : vector<1x128xi1> to vector<1x128xi1>
    %283 = vector.broadcast %282 : vector<1x128xi1> to vector<8x128xi1>
    %284 = vector.broadcast %cst_66 : f32 to vector<8x128xf32>
    %285 = arith.select %283, %281, %284 : vector<8x128xi1>, vector<8x128xf32>
    %c6_i32_67 = arith.constant 6 : i32
    %286 = vector.broadcast %c6_i32_67 : i32 to vector<1x128xi32>
    %287 = arith.cmpi sge, %5, %286 : vector<1x128xi32>
    %c6_i32_68 = arith.constant 6 : i32
    %288 = tpu.dynamic_rotate %250 by %c6_i32_68 dim 1 : vector<8x128xf32>, i32 -> vector<8x128xf32>
    %cst_69 = arith.constant 0.000000e+00 : f32
    %289 = vector.shape_cast %287 : vector<1x128xi1> to vector<1x128xi1>
    %290 = vector.broadcast %289 : vector<1x128xi1> to vector<8x128xi1>
    %291 = vector.broadcast %cst_69 : f32 to vector<8x128xf32>
    %292 = arith.select %290, %288, %291 : vector<8x128xi1>, vector<8x128xf32>
    %c7_i32_70 = arith.constant 7 : i32
    %293 = vector.broadcast %c7_i32_70 : i32 to vector<1x128xi32>
    %294 = arith.cmpi sge, %5, %293 : vector<1x128xi32>
    %c7_i32_71 = arith.constant 7 : i32
    %295 = tpu.dynamic_rotate %250 by %c7_i32_71 dim 1 : vector<8x128xf32>, i32 -> vector<8x128xf32>
    %cst_72 = arith.constant 0.000000e+00 : f32
    %296 = vector.shape_cast %294 : vector<1x128xi1> to vector<1x128xi1>
    %297 = vector.broadcast %296 : vector<1x128xi1> to vector<8x128xi1>
    %298 = vector.broadcast %cst_72 : f32 to vector<8x128xf32>
    %299 = arith.select %297, %295, %298 : vector<8x128xi1>, vector<8x128xf32>
    %300 = vector.extract_strided_slice %4 {offsets = [22, 0, 0], sizes = [1, 8, 128], strides = [1, 1, 1]} : vector<31x8x128xf32> to vector<1x8x128xf32>
    %301 = vector.shape_cast %300 : vector<1x8x128xf32> to vector<8x128xf32>
    %302 = arith.mulf %301, %250 : vector<8x128xf32>
    %303 = vector.extract_strided_slice %4 {offsets = [23, 0, 0], sizes = [1, 8, 128], strides = [1, 1, 1]} : vector<31x8x128xf32> to vector<1x8x128xf32>
    %304 = vector.shape_cast %303 : vector<1x8x128xf32> to vector<8x128xf32>
    %305 = arith.mulf %304, %257 : vector<8x128xf32>
    %306 = vector.extract_strided_slice %4 {offsets = [24, 0, 0], sizes = [1, 8, 128], strides = [1, 1, 1]} : vector<31x8x128xf32> to vector<1x8x128xf32>
    %307 = vector.shape_cast %306 : vector<1x8x128xf32> to vector<8x128xf32>
    %308 = arith.mulf %307, %264 : vector<8x128xf32>
    %309 = vector.extract_strided_slice %4 {offsets = [25, 0, 0], sizes = [1, 8, 128], strides = [1, 1, 1]} : vector<31x8x128xf32> to vector<1x8x128xf32>
    %310 = vector.shape_cast %309 : vector<1x8x128xf32> to vector<8x128xf32>
    %311 = arith.mulf %310, %271 : vector<8x128xf32>
    %312 = vector.extract_strided_slice %4 {offsets = [26, 0, 0], sizes = [1, 8, 128], strides = [1, 1, 1]} : vector<31x8x128xf32> to vector<1x8x128xf32>
    %313 = vector.shape_cast %312 : vector<1x8x128xf32> to vector<8x128xf32>
    %314 = arith.mulf %313, %278 : vector<8x128xf32>
    %315 = vector.extract_strided_slice %4 {offsets = [27, 0, 0], sizes = [1, 8, 128], strides = [1, 1, 1]} : vector<31x8x128xf32> to vector<1x8x128xf32>
    %316 = vector.shape_cast %315 : vector<1x8x128xf32> to vector<8x128xf32>
    %317 = arith.mulf %316, %285 : vector<8x128xf32>
    %318 = vector.extract_strided_slice %4 {offsets = [28, 0, 0], sizes = [1, 8, 128], strides = [1, 1, 1]} : vector<31x8x128xf32> to vector<1x8x128xf32>
    %319 = vector.shape_cast %318 : vector<1x8x128xf32> to vector<8x128xf32>
    %320 = arith.mulf %319, %292 : vector<8x128xf32>
    %321 = vector.extract_strided_slice %4 {offsets = [29, 0, 0], sizes = [1, 8, 128], strides = [1, 1, 1]} : vector<31x8x128xf32> to vector<1x8x128xf32>
    %322 = vector.shape_cast %321 : vector<1x8x128xf32> to vector<8x128xf32>
    %323 = arith.mulf %322, %299 : vector<8x128xf32>
    %324 = arith.addf %302, %305 : vector<8x128xf32>
    %325 = arith.addf %308, %311 : vector<8x128xf32>
    %326 = arith.addf %314, %317 : vector<8x128xf32>
    %327 = arith.addf %320, %323 : vector<8x128xf32>
    %328 = arith.addf %324, %325 : vector<8x128xf32>
    %329 = arith.addf %326, %327 : vector<8x128xf32>
    %330 = arith.addf %328, %329 : vector<8x128xf32>
    %c0_73 = arith.constant 0 : index
    %c0_74 = arith.constant 0 : index
    %331 = vector.load %arg5[%c0_73, %c0_74] : memref<8x128xf32, #tpu.memory_space<vmem>>, vector<8x128xf32>
    tpu.vector_store %arg5[%c0_73, %c0_74], %330 {strides = array<i32>} : memref<8x128xf32, #tpu.memory_space<vmem>>, vector<8x128xf32>,
    return
  }
  func.func @transform_0(%arg0: i32, %arg1: i32) -> (i32, i32, i32) {
    %c0_i32 = arith.constant 0 : i32
    %c0_i32_0 = arith.constant 0 : i32
    return %c0_i32, %arg0, %arg1 : i32, i32, i32
  }
  func.func @transform_1(%arg0: i32, %arg1: i32) -> (i32, i32) {
    %c0_i32 = arith.constant 0 : i32
    return %arg0, %arg1 : i32, i32
  }
  func.func @transform_2(%arg0: i32, %arg1: i32) -> (i32, i32) {
    %c0_i32 = arith.constant 0 : i32
    %c0_i32_0 = arith.constant 0 : i32
    %c0_i32_1 = arith.constant 0 : i32
    return %c0_i32, %c0_i32_0 : i32, i32
  }
  func.func @transform_3(%arg0: i32, %arg1: i32) -> (i32, i32) {
    %c0_i32 = arith.constant 0 : i32
    return %arg0, %arg1 : i32, i32
  }
}

</mosaic_0001>

<llo_original>
// kernel: source_filter_synth.1
$region0: #{source_filter_synth.1}
  #allocation0 [shape = 'u32[]', space=smem, size = 0x4, offset = 0x4, fixed_abs, tag = 'smem constant byte address 0x4 - core index']
  #allocation1 [shape = 'u32[144,128]{1,0:T(1,128)}', space=vmem, size = 0x12000, scoped, tag = 'internal scratch']
  #allocation2 [shape = 'f32[3,8,128]{2,1,0:T(8,128)}', space=vmem, size = 0x3000, scoped, tag = 'scratch operand']
  %s0 = inlined_call_operand.vmem [shape: f32[31,8,8], index: 0, kind: input, shape index: {}]
  %s1 = inlined_call_operand.vmem [shape: f32[8,128], index: 1, kind: input, shape index: {}]
  %s2 = inlined_call_operand.vmem [shape: f32[8,128], index: 2, kind: input, shape index: {}]
  %s3 = inlined_call_operand.vmem [shape: f32[8,128], index: 3, kind: output, shape index: {}]
  %s4 = sld [smem:[#allocation0]]
  $region22: #{source_filter_synth.1} parent=0
    _
  %s6 = ssub.s32 1, %s4
  %s7 = scalar_select 0, %s6, %s4
  // Predicated region
  $region2: #{source_filter_synth.1} parent=0 // pred_check
    _
  $region3: #{source_filter_synth.1} parent=0 // pred_check_branch
    %9 = sbr.rel (0) target = $region5
  $region4: #{source_filter_synth.1} parent=0 // pred_region
    _
  $region5: #{source_filter_synth.1} parent=0 // pred_fallthru
    _
  // Predicated region
  $region6: #{source_filter_synth.1} parent=0 // pred_check
    _
  $region7: #{source_filter_synth.1} parent=0 // pred_check_branch
    %11 = sbr.rel (0) target = $region9
  $region8: #{source_filter_synth.1} parent=0 // pred_region
    _
  $region9: #{source_filter_synth.1} parent=0 // pred_fallthru
    _
  // Predicated region
  $region10: #{source_filter_synth.1} parent=0 // pred_check
    _
  $region11: #{source_filter_synth.1} parent=0 // pred_check_branch
    %13 = sbr.rel (0) target = $region13
  $region12: #{source_filter_synth.1} parent=0 // pred_region
    _
  $region13: #{source_filter_synth.1} parent=0 // pred_fallthru
    _
  %v14 = vld [vmem:[%s0] sm:$0xff]
  %v15 = vld [vmem:[%s0 + $0x8] sm:$0xff]
  %v16 = vld [vmem:[%s0 + $0x10] sm:$0xff]
  %v17 = vld [vmem:[%s0 + $0x18] sm:$0xff]
  %v18 = vld [vmem:[%s0 + $0x20] sm:$0xff]
  %v19 = vld [vmem:[%s0 + $0x28] sm:$0xff]
  %v20 = vld [vmem:[%s0 + $0x30] sm:$0xff]
  %v21 = vld [vmem:[%s0 + $0x38] sm:$0xff]
  %v22 = vld [vmem:[%s0 + $0x40] sm:$0xff]
  %v23 = vld [vmem:[%s0 + $0x48] sm:$0xff]
  %v24 = vld [vmem:[%s0 + $0x50] sm:$0xff]
  %v25 = vld [vmem:[%s0 + $0x58] sm:$0xff]
  %v26 = vld [vmem:[%s0 + $0x60] sm:$0xff]
  %v27 = vld [vmem:[%s0 + $0x68] sm:$0xff]
  %v28 = vld [vmem:[%s0 + $0x70] sm:$0xff]
  %v29 = vld [vmem:[%s0 + $0x78] sm:$0xff]
  %v30 = vld [vmem:[%s0 + $0x80] sm:$0xff]
  %v31 = vld [vmem:[%s0 + $0x88] sm:$0xff]
  %v32 = vld [vmem:[%s0 + $0x90] sm:$0xff]
  %v33 = vld [vmem:[%s0 + $0x98] sm:$0xff]
  %v34 = vld [vmem:[%s0 + $0xa0] sm:$0xff]
  %v35 = vld [vmem:[%s0 + $0xa8] sm:$0xff]
  %v36 = vld [vmem:[%s0 + $0xb0] sm:$0xff]
  %v37 = vld [vmem:[%s0 + $0xb8] sm:$0xff]
  %v38 = vld [vmem:[%s0 + $0xc0] sm:$0xff]
  %v39 = vld [vmem:[%s0 + $0xc8] sm:$0xff]
  %v40 = vld [vmem:[%s0 + $0xd0] sm:$0xff]
  %v41 = vld [vmem:[%s0 + $0xd8] sm:$0xff]
  %v42 = vld [vmem:[%s0 + $0xe0] sm:$0xff]
  %v43 = vld [vmem:[%s0 + $0xe8] sm:$0xff]
  %v44 = vld [vmem:[%s0 + $0xf0] sm:$0xff]
  %v45 = vld [vmem:[%s2] sm:$0xff]
  %vm46 = vcmask 64512
  %v48 = vsel %vm46, %v14, 0
  %v51 = vsel %vm46, %v15, 0
  %v54 = vsel %vm46, %v16, 0
  %v57 = vsel %vm46, %v17, 0
  %v60 = vsel %vm46, %v18, 0
  %v63 = vsel %vm46, %v19, 0
  %v66 = vsel %vm46, %v20, 0
  %v69 = vsel %vm46, %v21, 0
  %v72 = vsel %vm46, %v22, 0
  %v75 = vsel %vm46, %v23, 0
  %v78 = vsel %vm46, %v24, 0
  %v81 = vsel %vm46, %v25, 0
  %v84 = vsel %vm46, %v26, 0
  %v87 = vsel %vm46, %v27, 0
  %v90 = vsel %vm46, %v28, 0
  %v93 = vsel %vm46, %v29, 0
  %v96 = vsel %vm46, %v30, 0
  %v99 = vsel %vm46, %v31, 0
  %v102 = vsel %vm46, %v32, 0
  %v105 = vsel %vm46, %v33, 0
  %v108 = vsel %vm46, %v34, 0
  %v111 = vsel %vm46, %v35, 0
  %v114 = vsel %vm46, %v36, 0
  %v117 = vsel %vm46, %v37, 0
  %v120 = vsel %vm46, %v38, 0
  %v123 = vsel %vm46, %v39, 0
  %v126 = vsel %vm46, %v40, 0
  %v129 = vsel %vm46, %v41, 0
  %v132 = vsel %vm46, %v42, 0
  %v135 = vsel %vm46, %v43, 0
  %v138 = vsel %vm46, %v44, 0
  %140 = vmatprep.subr.mxu0 0.0
  %141 = vmatpush1.msra.mxu0 %v45
  %142 = vmatprep.subr.mxu0 0.0
  %143 = vmatpush1.msra.mxu0 0.0
  %144 = vmatprep.subr.mxu0 0.0
  %145 = vmatpush1.msra.mxu0 0.0
  %146 = vmatprep.subr.mxu0 0.0
  %147 = vmatpush1.msra.mxu0 0.0
  %148 = vmatprep.subr.mxu0 0.0
  %149 = vmatpush1.msra.mxu0 0.0
  %150 = vmatprep.subr.mxu0 0.0
  %151 = vmatpush1.msra.mxu0 0.0
  %152 = vmatprep.subr.mxu0 0.0
  %153 = vmatpush1.msra.mxu0 0.0
  %154 = vmatprep.subr.mxu0 0.0
  %155 = vmatpush1.msra.mxu0 0.0
  %156 = vmatprep.subr.mxu0 0.0
  %157 = vmatpush1.msra.mxu0 0.0
  %158 = vmatprep.subr.mxu0 0.0
  %159 = vmatpush1.msra.mxu0 0.0
  %160 = vmatprep.subr.mxu0 0.0
  %161 = vmatpush1.msra.mxu0 0.0
  %162 = vmatprep.subr.mxu0 0.0
  %163 = vmatpush1.msra.mxu0 0.0
  %164 = vmatprep.subr.mxu0 0.0
  %165 = vmatpush1.msra.mxu0 0.0
  %166 = vmatprep.subr.mxu0 0.0
  %167 = vmatpush1.msra.mxu0 0.0
  %168 = vmatprep.subr.mxu0 0.0
  %169 = vmatpush1.msra.mxu0 0.0
  %170 = vmatprep.subr.mxu0 0.0
  %171 = vmatpush1.msra.mxu0 0.0
  %172 = vmatprep.subr.mxu0 0.0
  %173 = vmatpush1.msra.mxu0 0.0
  %174 = vmatprep.subr.mxu0 0.0
  %175 = vmatpush1.msra.mxu0 0.0
  %176 = vmatprep.subr.mxu0 0.0
  %177 = vmatpush1.msra.mxu0 0.0
  %178 = vmatprep.subr.mxu0 0.0
  %179 = vmatpush1.msra.mxu0 0.0
  %180 = vmatprep.subr.mxu0 0.0
  %181 = vmatpush1.msra.mxu0 0.0
  %182 = vmatprep.subr.mxu0 0.0
  %183 = vmatpush1.msra.mxu0 0.0
  %184 = vmatprep.subr.mxu0 0.0
  %185 = vmatpush1.msra.mxu0 0.0
  %186 = vmatprep.subr.mxu0 0.0
  %187 = vmatpush1.msra.mxu0 0.0
  %188 = vmatprep.subr.mxu0 0.0
  %189 = vmatpush1.msra.mxu0 0.0
  %190 = vmatprep.subr.mxu0 0.0
  %191 = vmatpush1.msra.mxu0 0.0
  %192 = vmatprep.subr.mxu0 0.0
  %193 = vmatpush1.msra.mxu0 0.0
  %194 = vmatprep.subr.mxu0 0.0
  %195 = vmatpush1.msra.mxu0 0.0
  %196 = vmatprep.subr.mxu0 0.0
  %197 = vmatpush1.msra.mxu0 0.0
  %198 = vmatprep.subr.mxu0 0.0
  %199 = vmatpush1.msra.mxu0 0.0
  %200 = vmatprep.subr.mxu0 0.0
  %201 = vmatpush1.msra.mxu0 0.0
  %202 = vmatprep.subr.mxu0 0.0
  %203 = vmatpush1.msra.mxu0 0.0
  %204 = vmatprep.mubr.f32.mxu0 0.0
  %205 = vmatmul.mubr.f32.gmra.mrb[0].mxu0 %v48
  %v206 = vpop.f32.mrb[0].mxu0
  %v207 = vadd.f32 0.0, %v206
  %v208 = vpop.f32.mrb[0].mxu0
  %209 = vmatprep.mubr.f32.mxu0 0.0
  %210 = vmatmul.mubr.f32.gmra.mrb[0].mxu0 %v51
  %v211 = vpop.f32.mrb[0].mxu0
  %v212 = vadd.f32 0.0, %v211
  %v213 = vpop.f32.mrb[0].mxu0
  %214 = vmatprep.mubr.f32.mxu0 0.0
  %215 = vmatmul.mubr.f32.gmra.mrb[0].mxu0 %v54
  %v216 = vpop.f32.mrb[0].mxu0
  %v217 = vadd.f32 0.0, %v216
  %v218 = vpop.f32.mrb[0].mxu0
  %219 = vmatprep.mubr.f32.mxu0 0.0
  %220 = vmatmul.mubr.f32.gmra.mrb[0].mxu0 %v57
  %v221 = vpop.f32.mrb[0].mxu0
  %v222 = vadd.f32 0.0, %v221
  %v223 = vpop.f32.mrb[0].mxu0
  %224 = vmatprep.mubr.f32.mxu0 0.0
  %225 = vmatmul.mubr.f32.gmra.mrb[0].mxu0 %v60
  %v226 = vpop.f32.mrb[0].mxu0
  %v227 = vadd.f32 0.0, %v226
  %v228 = vpop.f32.mrb[0].mxu0
  %229 = vmatprep.mubr.f32.mxu0 0.0
  %230 = vmatmul.mubr.f32.gmra.mrb[0].mxu0 %v63
  %v231 = vpop.f32.mrb[0].mxu0
  %v232 = vadd.f32 0.0, %v231
  %v233 = vpop.f32.mrb[0].mxu0
  %234 = vmatprep.mubr.f32.mxu0 0.0
  %235 = vmatmul.mubr.f32.gmra.mrb[0].mxu0 %v66
  %v236 = vpop.f32.mrb[0].mxu0
  %v237 = vadd.f32 0.0, %v236
  %v238 = vpop.f32.mrb[0].mxu0
  %239 = vmatprep.mubr.f32.mxu0 0.0
  %240 = vmatmul.mubr.f32.gmra.mrb[0].mxu0 %v69
  %v241 = vpop.f32.mrb[0].mxu0
  %v242 = vadd.f32 0.0, %v241
  %v243 = vpop.f32.mrb[0].mxu0
  %244 = vmatprep.mubr.f32.mxu0 0.0
  %245 = vmatmul.mubr.f32.gmra.mrb[0].mxu0 %v72
  %v246 = vpop.f32.mrb[0].mxu0
  %v247 = vadd.f32 0.0, %v246
  %v248 = vpop.f32.mrb[0].mxu0
  %249 = vmatprep.mubr.f32.mxu0 0.0
  %250 = vmatmul.mubr.f32.gmra.mrb[0].mxu0 %v75
  %v251 = vpop.f32.mrb[0].mxu0
  %v252 = vadd.f32 0.0, %v251
  %v253 = vpop.f32.mrb[0].mxu0
  %254 = vmatprep.mubr.f32.mxu0 0.0
  %255 = vmatmul.mubr.f32.gmra.mrb[0].mxu0 %v78
  %v256 = vpop.f32.mrb[0].mxu0
  %v257 = vadd.f32 0.0, %v256
  %v258 = vpop.f32.mrb[0].mxu0
  %259 = vmatprep.mubr.f32.mxu0 0.0
  %260 = vmatmul.mubr.f32.gmra.mrb[0].mxu0 %v81
  %v261 = vpop.f32.mrb[0].mxu0
  %v262 = vadd.f32 0.0, %v261
  %v263 = vpop.f32.mrb[0].mxu0
  %264 = vmatprep.mubr.f32.mxu0 0.0
  %265 = vmatmul.mubr.f32.gmra.mrb[0].mxu0 %v84
  %v266 = vpop.f32.mrb[0].mxu0
  %v267 = vadd.f32 0.0, %v266
  %v268 = vpop.f32.mrb[0].mxu0
  %269 = vmatprep.mubr.f32.mxu0 0.0
  %270 = vmatmul.mubr.f32.gmra.mrb[0].mxu0 %v87
  %v271 = vpop.f32.mrb[0].mxu0
  %v272 = vadd.f32 0.0, %v271
  %v273 = vpop.f32.mrb[0].mxu0
  %274 = vmatprep.mubr.f32.mxu0 0.0
  %275 = vmatmul.mubr.f32.gmra.mrb[0].mxu0 %v90
  %v276 = vpop.f32.mrb[0].mxu0
  %v277 = vadd.f32 0.0, %v276
  %v278 = vpop.f32.mrb[0].mxu0
  %279 = vmatprep.mubr.f32.mxu0 0.0
  %280 = vmatmul.mubr.f32.gmra.mrb[0].mxu0 %v93
  %v281 = vpop.f32.mrb[0].mxu0
  %v282 = vadd.f32 0.0, %v281
  %v283 = vpop.f32.mrb[0].mxu0
  %284 = vmatprep.mubr.f32.mxu0 0.0
  %285 = vmatmul.mubr.f32.gmra.mrb[0].mxu0 %v96
  %v286 = vpop.f32.mrb[0].mxu0
  %v287 = vadd.f32 0.0, %v286
  %v288 = vpop.f32.mrb[0].mxu0
  %289 = vmatprep.mubr.f32.mxu0 0.0
  %290 = vmatmul.mubr.f32.gmra.mrb[0].mxu0 %v99
  %v291 = vpop.f32.mrb[0].mxu0
  %v292 = vadd.f32 0.0, %v291
  %v293 = vpop.f32.mrb[0].mxu0
  %294 = vmatprep.mubr.f32.mxu0 0.0
  %295 = vmatmul.mubr.f32.gmra.mrb[0].mxu0 %v102
  %v296 = vpop.f32.mrb[0].mxu0
  %v297 = vadd.f32 0.0, %v296
  %v298 = vpop.f32.mrb[0].mxu0
  %299 = vmatprep.mubr.f32.mxu0 0.0
  %300 = vmatmul.mubr.f32.gmra.mrb[0].mxu0 %v105
  %v301 = vpop.f32.mrb[0].mxu0
  %v302 = vadd.f32 0.0, %v301
  %v303 = vpop.f32.mrb[0].mxu0
  %304 = vmatprep.mubr.f32.mxu0 0.0
  %305 = vmatmul.mubr.f32.gmra.mrb[0].mxu0 %v108
  %v306 = vpop.f32.mrb[0].mxu0
  %v307 = vadd.f32 0.0, %v306
  %v308 = vpop.f32.mrb[0].mxu0
  %309 = vmatprep.mubr.f32.mxu0 0.0
  %310 = vmatmul.mubr.f32.gmra.mrb[0].mxu0 %v111
  %v311 = vpop.f32.mrb[0].mxu0
  %v312 = vadd.f32 0.0, %v311
  %v313 = vpop.f32.mrb[0].mxu0
  %314 = vmatprep.mubr.f32.mxu0 0.0
  %315 = vmatmul.mubr.f32.gmra.mrb[0].mxu0 %v114
  %v316 = vpop.f32.mrb[0].mxu0
  %v317 = vadd.f32 0.0, %v316
  %v318 = vpop.f32.mrb[0].mxu0
  %319 = vmatprep.mubr.f32.mxu0 0.0
  %320 = vmatmul.mubr.f32.gmra.mrb[0].mxu0 %v117
  %v321 = vpop.f32.mrb[0].mxu0
  %v322 = vadd.f32 0.0, %v321
  %v323 = vpop.f32.mrb[0].mxu0
  %324 = vmatprep.mubr.f32.mxu0 0.0
  %325 = vmatmul.mubr.f32.gmra.mrb[0].mxu0 %v120
  %v326 = vpop.f32.mrb[0].mxu0
  %v327 = vadd.f32 0.0, %v326
  %v328 = vpop.f32.mrb[0].mxu0
  %329 = vmatprep.mubr.f32.mxu0 0.0
  %330 = vmatmul.mubr.f32.gmra.mrb[0].mxu0 %v123
  %v331 = vpop.f32.mrb[0].mxu0
  %v332 = vadd.f32 0.0, %v331
  %v333 = vpop.f32.mrb[0].mxu0
  %334 = vmatprep.mubr.f32.mxu0 0.0
  %335 = vmatmul.mubr.f32.gmra.mrb[0].mxu0 %v126
  %v336 = vpop.f32.mrb[0].mxu0
  %v337 = vadd.f32 0.0, %v336
  %v338 = vpop.f32.mrb[0].mxu0
  %339 = vmatprep.mubr.f32.mxu0 0.0
  %340 = vmatmul.mubr.f32.gmra.mrb[0].mxu0 %v129
  %v341 = vpop.f32.mrb[0].mxu0
  %v342 = vadd.f32 0.0, %v341
  %v343 = vpop.f32.mrb[0].mxu0
  %344 = vmatprep.mubr.f32.mxu0 0.0
  %345 = vmatmul.mubr.f32.gmra.mrb[0].mxu0 %v132
  %v346 = vpop.f32.mrb[0].mxu0
  %v347 = vadd.f32 0.0, %v346
  %v348 = vpop.f32.mrb[0].mxu0
  %349 = vmatprep.mubr.f32.mxu0 0.0
  %350 = vmatmul.mubr.f32.gmra.mrb[0].mxu0 %v135
  %v351 = vpop.f32.mrb[0].mxu0
  %v352 = vadd.f32 0.0, %v351
  %v353 = vpop.f32.mrb[0].mxu0
  %354 = vmatprep.mubr.f32.mxu0 0.0
  %355 = vmatmul.mubr.f32.gmra.mrb[0].mxu0 %v138
  %v356 = vpop.f32.mrb[0].mxu0
  %v357 = vadd.f32 0.0, %v356
  %v358 = vpop.f32.mrb[0].mxu0
  %359 = vdwg.mxu0
  %v360 = vlaneseq
  %v361 = vand.u32 %v360, 127
  %vm362 = vcmp.lt.s32.totalorder %v361, 0
  %v363 = vsub.s32 0, %v361
  %v364 = vsel %vm362, %v363, %v361
  %v365 = vshrl.u32 %v364, 4
  %v366 = vand.u32 %v364, 15
  %v367 = vsub.s32 0, %v366
  %v368 = vsel %vm362, %v367, %v366
  %vm369 = vcmp.ne.s32.totalorder %v368, 0
  %vm370 = vcmp.lt.s32.totalorder %v368, 0
  %vm371 = vmand %vm370, %vm369
  %v372 = vadd.s32 %v368, 16
  %v373 = vsel %vm371, %v372, %v368
  %v374 = vcvt.s32.f32 %v373
  %v375 = vmul.f32 %v374, 0.0625
  %v376 = vmul.f32 %v375, %v242
  %v377 = vadd.f32 %v207, %v376
  %v378 = vmul.f32 %v375, %v247
  %v379 = vadd.f32 %v212, %v378
  %v380 = vmul.f32 %v375, %v252
  %v381 = vadd.f32 %v217, %v380
  %382 = vrot.lane.b32.xlu0 %v377, 1
  %v383 = vpop.permute.xlu0 %382
  %vm384 = vcmp.ge.s32.totalorder %v373, 1
  %v385 = vsel %vm384, 1, 0
  %vm386 = vcmp.eq.s32.totalorder %v385, 1
  %v387 = vsel %vm386, %v383, 0.0
  %v388 = vadd.f32 %v377, %v387
  %389 = vrot.lane.b32.xlu0 %v388, 2
  %v390 = vpop.permute.xlu0 %389
  %vm391 = vcmp.ge.s32.totalorder %v373, 2
  %v392 = vsel %vm391, 1, 0
  %vm393 = vcmp.eq.s32.totalorder %v392, 1
  %v394 = vsel %vm393, %v390, 0.0
  %v395 = vadd.f32 %v388, %v394
  %396 = vrot.lane.b32.xlu0 %v395, 4
  %v397 = vpop.permute.xlu0 %396
  %vm398 = vcmp.ge.s32.totalorder %v373, 4
  %v399 = vsel %vm398, 1, 0
  %vm400 = vcmp.eq.s32.totalorder %v399, 1
  %v401 = vsel %vm400, %v397, 0.0
  %v402 = vadd.f32 %v395, %v401
  %403 = vrot.lane.b32.xlu0 %v402, 8
  %v404 = vpop.permute.xlu0 %403
  %vm405 = vcmp.ge.s32.totalorder %v373, 8
  %v406 = vsel %vm405, 1, 0
  %vm407 = vcmp.eq.s32.totalorder %v406, 1
  %v408 = vsel %vm407, %v404, 0.0
  %v409 = vadd.f32 %v402, %v408
  %v410 = vadd.f32 %v357, %v409
  %v411 = vfloor.f32 %v410
  %v412 = vsub.f32 %v410, %v411
  %v413 = vmul.f32 %v375, %v257
  %v414 = vadd.f32 %v222, %v413
  %v415 = vfloor.f32 %v412
  %v416 = vsub.f32 %v412, %v415
  %v417 = vsub.f32 %v416, 0.5
  %v418 = vmul.f32 %v417, -16.0
  %v419 = vand.u32 2147483647, %v417
  %v420 = vsub.f32 0.5, %v419
  %v421 = vmul.f32 %v418, %v420
  %v422 = vmul.f32 %v414, %v421
  %v423 = vmul.f32 %v375, %v262
  %v424 = vadd.f32 %v227, %v423
  %v425 = vmul.f32 %v412, 2.0
  %v426 = vfloor.f32 %v425
  %v427 = vsub.f32 %v425, %v426
  %v428 = vsub.f32 %v427, 0.5
  %v429 = vmul.f32 %v428, -16.0
  %v430 = vand.u32 2147483647, %v428
  %v431 = vsub.f32 0.5, %v430
  %v432 = vmul.f32 %v429, %v431
  %v433 = vmul.f32 %v424, %v432
  %v434 = vmul.f32 %v375, %v267
  %v435 = vadd.f32 %v232, %v434
  %v436 = vmul.f32 %v412, 3.0
  %v437 = vfloor.f32 %v436
  %v438 = vsub.f32 %v436, %v437
  %v439 = vsub.f32 %v438, 0.5
  %v440 = vmul.f32 %v439, -16.0
  %v441 = vand.u32 2147483647, %v439
  %v442 = vsub.f32 0.5, %v441
  %v443 = vmul.f32 %v440, %v442
  %v444 = vmul.f32 %v435, %v443
  %v445 = vmul.f32 %v375, %v272
  %v446 = vadd.f32 %v237, %v445
  %v447 = vmul.f32 %v412, 4.0
  %v448 = vfloor.f32 %v447
  %v449 = vsub.f32 %v447, %v448
  %v450 = vsub.f32 %v449, 0.5
  %v451 = vmul.f32 %v450, -16.0
  %v452 = vand.u32 2147483647, %v450
  %v453 = vsub.f32 0.5, %v452
  %v454 = vmul.f32 %v451, %v453
  %v455 = vmul.f32 %v446, %v454
  %v456 = vadd.f32 %v422, %v433
  %v457 = vadd.f32 %v444, %v455
  %v458 = vadd.f32 %v456, %v457
  %v459 = vmul.f32 %v458, %v379
  %v460 = vld [vmem:[%s1] sm:$0xff]
  %v461 = vmul.f32 %v381, 1.442695
  %v462 = vpow.pop %v461
  %v463 = vmul.f32 %v460, %v462
  %vm464 = vcmp.ge.s32.totalorder %v361, 1
  %465 = vrot.lane.b32.xlu0 %v463, 1
  %v466 = vpop.permute.xlu0 %465
  %v467 = vsel %vm464, 1, 0
  %vm468 = vcmp.eq.s32.totalorder %v467, 1
  %v469 = vsel %vm468, %v466, 0.0
  %vm470 = vcmp.ge.s32.totalorder %v361, 2
  %471 = vrot.lane.b32.xlu0 %v463, 2
  %v472 = vpop.permute.xlu0 %471
  %v473 = vsel %vm470, 1, 0
  %vm474 = vcmp.eq.s32.totalorder %v473, 1
  %v475 = vsel %vm474, %v472, 0.0
  %vm476 = vcmp.ge.s32.totalorder %v361, 3
  %477 = vrot.lane.b32.xlu0 %v463, 3
  %v478 = vpop.permute.xlu0 %477
  %v479 = vsel %vm476, 1, 0
  %vm480 = vcmp.eq.s32.totalorder %v479, 1
  %v481 = vsel %vm480, %v478, 0.0
  %vm482 = vcmp.ge.s32.totalorder %v361, 4
  %483 = vrot.lane.b32.xlu0 %v463, 4
  %v484 = vpop.permute.xlu0 %483
  %v485 = vsel %vm482, 1, 0
  %vm486 = vcmp.eq.s32.totalorder %v485, 1
  %v487 = vsel %vm486, %v484, 0.0
  %vm488 = vcmp.ge.s32.totalorder %v361, 5
  %489 = vrot.lane.b32.xlu0 %v463, 5
  %v490 = vpop.permute.xlu0 %489
  %v491 = vsel %vm488, 1, 0
  %vm492 = vcmp.eq.s32.totalorder %v491, 1
  %v493 = vsel %vm492, %v490, 0.0
  %vm494 = vcmp.ge.s32.totalorder %v361, 6
  %495 = vrot.lane.b32.xlu0 %v463, 6
  %v496 = vpop.permute.xlu0 %495
  %v497 = vsel %vm494, 1, 0
  %vm498 = vcmp.eq.s32.totalorder %v497, 1
  %v499 = vsel %vm498, %v496, 0.0
  %vm500 = vcmp.ge.s32.totalorder %v361, 7
  %501 = vrot.lane.b32.xlu0 %v463, 7
  %v502 = vpop.permute.xlu0 %501
  %v503 = vsel %vm500, 1, 0
  %vm504 = vcmp.eq.s32.totalorder %v503, 1
  %v505 = vsel %vm504, %v502, 0.0
  %v506 = vmul.f32 %v277, %v463
  %v507 = vmul.f32 %v282, %v469
  %v508 = vmul.f32 %v287, %v475
  %v509 = vmul.f32 %v292, %v481
  %v510 = vmul.f32 %v297, %v487
  %v511 = vmul.f32 %v302, %v493
  %v512 = vmul.f32 %v307, %v499
  %v513 = vmul.f32 %v312, %v505
  %v514 = vadd.f32 %v506, %v507
  %v515 = vadd.f32 %v508, %v509
  %v516 = vadd.f32 %v510, %v511
  %v517 = vadd.f32 %v512, %v513
  %v518 = vadd.f32 %v514, %v515
  %v519 = vadd.f32 %v516, %v517
  %v520 = vadd.f32 %v518, %v519
  %v521 = vadd.f32 %v459, %v520
  %522 = vrot.lane.b32.xlu0 %v521, 1
  %v523 = vpop.permute.xlu0 %522
  %v524 = vsel %vm468, %v523, 0.0
  %525 = vrot.lane.b32.xlu0 %v521, 2
  %v526 = vpop.permute.xlu0 %525
  %v527 = vsel %vm474, %v526, 0.0
  %528 = vrot.lane.b32.xlu0 %v521, 3
  %v529 = vpop.permute.xlu0 %528
  %v530 = vsel %vm480, %v529, 0.0
  %531 = vrot.lane.b32.xlu0 %v521, 4
  %v532 = vpop.permute.xlu0 %531
  %v533 = vsel %vm486, %v532, 0.0
  %534 = vrot.lane.b32.xlu0 %v521, 5
  %v535 = vpop.permute.xlu0 %534
  %v536 = vsel %vm492, %v535, 0.0
  %537 = vrot.lane.b32.xlu0 %v521, 6
  %v538 = vpop.permute.xlu0 %537
  %v539 = vsel %vm498, %v538, 0.0
  %540 = vrot.lane.b32.xlu0 %v521, 7
  %v541 = vpop.permute.xlu0 %540
  %v542 = vsel %vm504, %v541, 0.0
  %v543 = vmul.f32 %v317, %v521
  %v544 = vmul.f32 %v322, %v524
  %v545 = vmul.f32 %v327, %v527
  %v546 = vmul.f32 %v332, %v530
  %v547 = vmul.f32 %v337, %v533
  %v548 = vmul.f32 %v342, %v536
  %v549 = vmul.f32 %v347, %v539
  %v550 = vmul.f32 %v352, %v542
  %v551 = vadd.f32 %v543, %v544
  %v552 = vadd.f32 %v545, %v546
  %v553 = vadd.f32 %v547, %v548
  %v554 = vadd.f32 %v549, %v550
  %v555 = vadd.f32 %v551, %v552
  %v556 = vadd.f32 %v553, %v554
  %v557 = vadd.f32 %v555, %v556
  %558 = vst [vmem:[%s3] sm:$0xff] %v557
  // Predicated region
  $region14: #{source_filter_synth.1} parent=0 // pred_check
    _
  $region15: #{source_filter_synth.1} parent=0 // pred_check_branch
    %560 = sbr.rel (0) target = $region17
  $region16: #{source_filter_synth.1} parent=0 // pred_region
    _
  $region17: #{source_filter_synth.1} parent=0 // pred_fallthru
    _
  // Predicated region
  $region18: #{source_filter_synth.1} parent=0 // pred_check
    _
  $region19: #{source_filter_synth.1} parent=0 // pred_check_branch
    %562 = sbr.rel (0) target = $region21
  $region20: #{source_filter_synth.1} parent=0 // pred_region
    _
  $region21: #{source_filter_synth.1} parent=0 // pred_fallthru
    _

</llo_original>
